<compile_context>
chip_gen: v7x
topology: tpu7x:2x2x1
jax: 0.10.0
libtpu: 0.0.40
codegen_flags: <defaults>
</compile_context>

<pallas_src>
import functools

import jax
import jax.numpy as jnp
import numpy as np
from jax.experimental import pallas as pl
from jax.experimental.pallas import tpu as pltpu


# -----------------------------------------------------------------------------
# Graph preprocessing (plain JAX, runs once, shared by both layers).
# -----------------------------------------------------------------------------
def build_norm_adjacency(edge_index, num_nodes, dtype=jnp.bfloat16):
    """Dense row-normalized adjacency: A_norm[dst, src] = (#edges dst<-src) / in_deg(dst)."""
    src, dst = edge_index[0], edge_index[1]
    a = jnp.zeros((num_nodes, num_nodes), jnp.float32).at[dst, src].add(1.0)
    deg = jnp.sum(a, axis=1, keepdims=True)
    inv_deg = jnp.where(deg > 0, 1.0 / jnp.maximum(deg, 1.0), 0.0)
    # NOTE: bf16 A limits 1/deg to ~3 significant digits.  An exact alternative is
    # integer counts in A and inv_deg applied to the f32 accumulator at finalize.
    return (a * inv_deg).astype(dtype)


# -----------------------------------------------------------------------------
# Fused small-graph kernel: both SAGEConv layers + ReLU in one pallas_call.
# A is streamed HBM->VMEM in row blocks (manual double-buffered DMA) so the load
# overlaps layer-1 compute; layer 2 reuses the VMEM-resident A (single HBM read).
# -----------------------------------------------------------------------------
def _fused_gnn_kernel(x_ref, w1l_ref, w1r_ref, b1_ref, w2l_ref, w2r_ref, b2_ref,
                      a_hbm, o_ref, a_vmem, h_vmem, sem, *, nblk, blk):
    def a_copy(b):
        return pltpu.make_async_copy(a_hbm.at[pl.ds(b * blk, blk)],
                                     a_vmem.at[pl.ds(b * blk, blk)],
                                     sem.at[b])

    a_copy(0).start()

    x = x_ref[...]                                   # (n, f_in) bf16
    w1l = w1l_ref[...]
    w1r = w1r_ref[...]
    b1 = b1_ref[...]

    # Layer 1, streamed over dst-row blocks: overlap block b compute with block
    # b+1 DMA.  nblk is small by construction, so a static unroll is fine.
    for b in range(nblk):
        a_copy(b).wait()
        if b + 1 < nblk:
            a_copy(b + 1).start()
        rows = pl.ds(b * blk, blk)                   # static slice (b is Python int)
        agg = jnp.dot(a_vmem[rows, :], x, preferred_element_type=jnp.float32)
        hb = (jnp.dot(agg.astype(jnp.bfloat16), w1l,
                      preferred_element_type=jnp.float32)
              + jnp.dot(x[b * blk:(b + 1) * blk, :], w1r,
                        preferred_element_type=jnp.float32)
              + b1)
        h_vmem[rows, :] = jnp.maximum(hb, 0.0).astype(jnp.bfloat16)

    # Layer 2: A is now fully VMEM-resident, no second HBM read of A.
    h = h_vmem[...]
    agg2 = jnp.dot(a_vmem[...], h, preferred_element_type=jnp.float32)
    o_ref[...] = (jnp.dot(agg2.astype(jnp.bfloat16), w2l_ref[...],
                          preferred_element_type=jnp.float32)
                  + jnp.dot(h, w2r_ref[...], preferred_element_type=jnp.float32)
                  + b2_ref[...]).astype(o_ref.dtype)


def _pick_fused_blk(n):
    """Row-block size for streaming A into VMEM (aligned, divides n)."""
    if n <= 512:
        return n
    for blk in (512, 256, 128, 64, 32, 16):
        if n % blk == 0:
            return blk
    return n          # odd n: single block (correct, just no DMA/compute overlap)


def _fused_vmem_bytes(n, f_in, hidden, f_out):
    """Conservative estimate of every VMEM buffer the fused kernel needs."""
    a = n * n * 2                      # resident A scratch (bf16)
    x = 2 * n * f_in * 2               # double-buffered x input
    h = n * hidden * 2                 # resident h scratch (bf16)
    o = 2 * n * f_out * 4              # double-buffered f32 output
    w = 4 * (f_in * hidden + hidden * f_out) * 2 + 2 * (hidden + f_out) * 4
    interm = 4 * n * (f_in + 2 * hidden + f_out)   # rough f32 matmul temporaries
    return a + x + h + o + w + interm


_FUSED_GATE_BYTES = 24 << 20    # run fused path only if the estimate fits this
_FUSED_VMEM_LIMIT = 48 << 20    # > v5e/v6e scoped defaults, < v7x 64 MiB physical


def gnn_fused(a_norm, x_bf16, params):
    n, f_in = x_bf16.shape
    hidden = params["w1_l"].shape[1]
    f_out = params["w2_l"].shape[1]
    blk = _pick_fused_blk(n)
    nblk = n // blk

    kernel = functools.partial(_fused_gnn_kernel, nblk=nblk, blk=blk)

    def full(shape):
        return pl.BlockSpec(shape, lambda i: (0, 0))

    flops = (2 * n * n * f_in + 4 * n * f_in * hidden
             + 2 * n * n * hidden + 4 * n * hidden * f_out)
    bytes_accessed = (n * n * 2 + n * f_in * 2 + n * f_out * 4
                      + 2 * 2 * (f_in * hidden + hidden * f_out))

    return pl.pallas_call(
        kernel,
        out_shape=jax.ShapeDtypeStruct((n, f_out), jnp.float32),
        grid_spec=pltpu.PrefetchScalarGridSpec(
            num_scalar_prefetch=0,
            grid=(1,),
            in_specs=[full((n, f_in)),
                      full((f_in, hidden)), full((f_in, hidden)), full((1, hidden)),
                      full((hidden, f_out)), full((hidden, f_out)), full((1, f_out)),
                      pl.BlockSpec(memory_space=pl.ANY)],   # A stays in HBM; manual DMA
            out_specs=full((n, f_out)),
            scratch_shapes=[pltpu.VMEM((n, n), jnp.bfloat16),       # resident A
                            pltpu.VMEM((n, hidden), jnp.bfloat16),  # resident h
                            pltpu.SemaphoreType.DMA((nblk,))]),
        compiler_params=pltpu.CompilerParams(
            dimension_semantics=("arbitrary",),
            vmem_limit_bytes=_FUSED_VMEM_LIMIT),
        cost_estimate=pl.CostEstimate(flops=flops, transcendentals=0,
                                      bytes_accessed=bytes_accessed),
    )(x_bf16,
      params["w1_l"].astype(jnp.bfloat16), params["w1_r"].astype(jnp.bfloat16),
      params["b1"].astype(jnp.float32),
      params["w2_l"].astype(jnp.bfloat16), params["w2_r"].astype(jnp.bfloat16),
      params["b2"].astype(jnp.float32),
      a_norm)


# -----------------------------------------------------------------------------
# Tiled per-layer kernel for graphs whose adjacency does not fit VMEM:
# grid = (dst-row tiles ["parallel"/CORE_PARALLEL], src contraction ["arbitrary"]).
# Post-project only: the inner loop is a single A_tile @ x dot into an f32 VMEM
# accumulator; W_l / W_r / bias / ReLU applied once at the k==last finalize.
# -----------------------------------------------------------------------------
def _sage_tiled_kernel(a_ref, xsrc_ref, xdst_ref, wl_ref, wr_ref, b_ref, o_ref,
                       acc_ref, *, relu, resident_x, tk):
    k = pl.program_id(1)

    @pl.when(k == 0)
    def _():
        acc_ref[...] = jnp.zeros_like(acc_ref)

    if resident_x:
        # x is VMEM-resident (fetched once); slice the k-th contraction chunk.
        xsrc = xsrc_ref[pl.ds(pl.multiple_of(k * tk, tk), tk), :]
    else:
        xsrc = xsrc_ref[...]
    acc_ref[...] += jnp.dot(a_ref[...], xsrc, preferred_element_type=jnp.float32)

    @pl.when(k == pl.num_programs(1) - 1)
    def _():
        out = (jnp.dot(acc_ref[...].astype(jnp.bfloat16), wl_ref[...],
                       preferred_element_type=jnp.float32)
               + jnp.dot(xdst_ref[...], wr_ref[...],
                         preferred_element_type=jnp.float32)
               + b_ref[...])
        if relu:
            out = jnp.maximum(out, 0.0)
        o_ref[...] = out.astype(o_ref.dtype)


def _pick_tile(n, prefer=(512, 256, 128)):
    """Largest preferred tile that divides n; falls back to the full axis."""
    for t in prefer:
        if t <= n and n % t == 0:
            return t
    return n


def sage_conv_tiled(a_norm, xin, w_l, w_r, b, *, relu, out_dtype,
                    tm=None, tk=None, core_parallel=False):
    n, f_in = xin.shape
    f_out = w_l.shape[1]
    tm = _pick_tile(n) if tm is None else min(tm, n)
    tk = _pick_tile(n) if tk is None else min(tk, n)
    if n % tm or n % tk:
        raise ValueError(f"N={n} must be divisible by tile sizes tm={tm}, tk={tk}")

    # Keep x fully VMEM-resident (single DMA for the whole grid) when small.
    resident_x = (n * f_in * 2) <= (2 << 20)
    if resident_x:
        xsrc_spec = pl.BlockSpec((n, f_in), lambda i, k: (0, 0))
    else:
        xsrc_spec = pl.BlockSpec((tk, f_in), lambda i, k: (k, 0))

    kernel = functools.partial(_sage_tiled_kernel, relu=relu,
                               resident_x=resident_x, tk=tk)

    # v7x: set core_parallel=True to shard the dst-row axis over both TensorCores.
    dim0 = pltpu.CORE_PARALLEL if core_parallel else "parallel"

    out_isz = jnp.dtype(out_dtype).itemsize
    flops = 2 * n * n * f_in + 4 * n * f_in * f_out + 2 * n * f_out
    bytes_accessed = (n * n * 2
                      + n * f_in * 2 * ((1 if resident_x else n // tm) + 1)
                      + 2 * f_in * f_out * 2 + f_out * 4
                      + n * f_out * out_isz)

    return pl.pallas_call(
        kernel,
        out_shape=jax.ShapeDtypeStruct((n, f_out), out_dtype),
        grid_spec=pltpu.PrefetchScalarGridSpec(
            num_scalar_prefetch=0,
            grid=(n // tm, n // tk),
            in_specs=[
                pl.BlockSpec((tm, tk), lambda i, k: (i, k)),       # A_norm tile
                xsrc_spec,                                         # x (contraction side)
                pl.BlockSpec((tm, f_in), lambda i, k: (i, 0)),     # x rows (root side)
                pl.BlockSpec((f_in, f_out), lambda i, k: (0, 0)),  # W_l
                pl.BlockSpec((f_in, f_out), lambda i, k: (0, 0)),  # W_r
                pl.BlockSpec((1, f_out), lambda i, k: (0, 0)),     # bias
            ],
            out_specs=pl.BlockSpec((tm, f_out), lambda i, k: (i, 0)),
            scratch_shapes=[pltpu.VMEM((tm, f_in), jnp.float32)]),
        compiler_params=pltpu.CompilerParams(
            dimension_semantics=(dim0, "arbitrary")),
        cost_estimate=pl.CostEstimate(flops=flops, transcendentals=0,
                                      bytes_accessed=bytes_accessed),
    )(a_norm, xin, xin,
      w_l.astype(jnp.bfloat16), w_r.astype(jnp.bfloat16), b.astype(jnp.float32))


# -----------------------------------------------------------------------------
# Top-level forward: build A_norm once, dispatch fused (small) vs tiled (large).
# -----------------------------------------------------------------------------
def gnn_forward(x, edge_index, params, *, force_tiled=False, tm=None, tk=None,
                core_parallel=False):
    n, f_in = x.shape
    hidden = params["w1_l"].shape[1]
    f_out = params["w2_l"].shape[1]
    a_norm = build_norm_adjacency(edge_index, n, jnp.bfloat16)
    x_bf16 = x.astype(jnp.bfloat16)

    if (not force_tiled
            and _fused_vmem_bytes(n, f_in, hidden, f_out) <= _FUSED_GATE_BYTES):
        return gnn_fused(a_norm, x_bf16, params)

    # Layer 1 emits bf16 directly so h streams straight into layer 2 (no cast op).
    h = sage_conv_tiled(a_norm, x_bf16, params["w1_l"], params["w1_r"], params["b1"],
                        relu=True, out_dtype=jnp.bfloat16, tm=tm, tk=tk,
                        core_parallel=core_parallel)
    return sage_conv_tiled(a_norm, h, params["w2_l"], params["w2_r"], params["b2"],
                           relu=False, out_dtype=jnp.float32, tm=tm, tk=tk,
                           core_parallel=core_parallel)


# -----------------------------------------------------------------------------
# References.
# -----------------------------------------------------------------------------
def gnn_reference_f32(x, edge_index, params):
    """Exact PyG SAGEConv mean-aggregation semantics in f32."""
    n = x.shape[0]
    src, dst = edge_index[0], edge_index[1]
    a = jnp.zeros((n, n), jnp.float32).at[dst, src].add(1.0)
    deg = jnp.sum(a, axis=1, keepdims=True)
    inv_deg = jnp.where(deg > 0, 1.0 / jnp.maximum(deg, 1.0), 0.0)

    def layer(xin, w_l, w_r, b):
        agg = (a @ xin) * inv_deg
        return agg @ w_l + xin @ w_r + b

    h = jax.nn.relu(layer(x, params["w1_l"], params["w1_r"], params["b1"]))
    return layer(h, params["w2_l"], params["w2_r"], params["b2"])


def gnn_reference_bf16(x, edge_index, params):
    """Pure-JAX mirror of the kernel arithmetic (bf16 operands, f32 MXU accumulation)."""
    n = x.shape[0]
    a = build_norm_adjacency(edge_index, n, jnp.bfloat16)
    xb = x.astype(jnp.bfloat16)

    def layer(xin, w_l, w_r, b, relu):
        wl = w_l.astype(jnp.bfloat16)
        wr = w_r.astype(jnp.bfloat16)
        agg = jnp.dot(a, xin, preferred_element_type=jnp.float32)
        out = (jnp.dot(agg.astype(jnp.bfloat16), wl, preferred_element_type=jnp.float32)
               + jnp.dot(xin, wr, preferred_element_type=jnp.float32)
               + b.astype(jnp.float32))
        if relu:
            out = jnp.maximum(out, 0.0)
        return out

    h = layer(xb, params["w1_l"], params["w1_r"], params["b1"], True).astype(jnp.bfloat16)
    return layer(h, params["w2_l"], params["w2_r"], params["b2"], False).astype(jnp.float32)


# -----------------------------------------------------------------------------
# Demo / self-test.
# -----------------------------------------------------------------------------
if __name__ == "__main__":
    N, F_IN, HIDDEN, F_OUT, E = 16, 8, 32, 16, 40

    key = jax.random.PRNGKey(0)
    (kx, ke1, ke2, k1, k2, k3, k4, kb1, kb2,
     kx2, ke3, ke4, kx3, ke5, ke6) = jax.random.split(key, 15)

    x = jax.random.normal(kx, (N, F_IN), dtype=jnp.float32)
    edge_index = jnp.stack([
        jax.random.randint(ke1, (E,), 0, N),   # source nodes
        jax.random.randint(ke2, (E,), 0, N),   # target nodes
    ]).astype(jnp.int32)

    def init(k, shape, fan_in):
        return (jax.random.normal(k, shape, dtype=jnp.float32)
                / jnp.sqrt(jnp.float32(fan_in)))

    params = {
        "w1_l": init(k1, (F_IN, HIDDEN), F_IN),
        "w1_r": init(k2, (F_IN, HIDDEN), F_IN),
        "b1": 0.1 * jax.random.normal(kb1, (1, HIDDEN), dtype=jnp.float32),
        "w2_l": init(k3, (HIDDEN, F_OUT), HIDDEN),
        "w2_r": init(k4, (HIDDEN, F_OUT), HIDDEN),
        "b2": 0.1 * jax.random.normal(kb2, (1, F_OUT), dtype=jnp.float32),
    }

    # --- primary path: small graph -> fused single-launch kernel (1 A block) -----
    out = jax.block_until_ready(gnn_forward(x, edge_index, params))
    assert out.shape == (N, F_OUT), out.shape
    ref_bf16 = jax.block_until_ready(gnn_reference_bf16(x, edge_index, params))
    ref_f32 = jax.block_until_ready(gnn_reference_f32(x, edge_index, params))
    np.testing.assert_allclose(np.asarray(out), np.asarray(ref_bf16),
                               rtol=1e-2, atol=1e-2)
    np.testing.assert_allclose(np.asarray(out), np.asarray(ref_f32),
                               rtol=1e-1, atol=1e-1)

    # --- scalable path: tiled (parallel, arbitrary) grid with k-accumulation -----
    N2, E2 = 256, 1024
    x2 = jax.random.normal(kx2, (N2, F_IN), dtype=jnp.float32)
    edge_index2 = jnp.stack([
        jax.random.randint(ke3, (E2,), 0, N2),
        jax.random.randint(ke4, (E2,), 0, N2),
    ]).astype(jnp.int32)

    out2 = jax.block_until_ready(
        gnn_forward(x2, edge_index2, params, force_tiled=True, tm=256, tk=128))
    assert out2.shape == (N2, F_OUT), out2.shape
    ref2_bf16 = jax.block_until_ready(gnn_reference_bf16(x2, edge_index2, params))
    ref2_f32 = jax.block_until_ready(gnn_reference_f32(x2, edge_index2, params))
    np.testing.assert_allclose(np.asarray(out2), np.asarray(ref2_bf16),
                               rtol=1e-2, atol=1e-2)
    np.testing.assert_allclose(np.asarray(out2), np.asarray(ref2_f32),
                               rtol=1e-1, atol=1e-1)

    # --- fused path with multi-block A streaming (DMA/compute overlap) -----------
    N3, E3 = 1024, 4096
    x3 = jax.random.normal(kx3, (N3, F_IN), dtype=jnp.float32)
    edge_index3 = jnp.stack([
        jax.random.randint(ke5, (E3,), 0, N3),
        jax.random.randint(ke6, (E3,), 0, N3),
    ]).astype(jnp.int32)

    out3 = jax.block_until_ready(gnn_forward(x3, edge_index3, params))
    assert out3.shape == (N3, F_OUT), out3.shape
    ref3_bf16 = jax.block_until_ready(gnn_reference_bf16(x3, edge_index3, params))
    np.testing.assert_allclose(np.asarray(out3), np.asarray(ref3_bf16),
                               rtol=1e-2, atol=1e-2)

    print("KERNEL_OK")
</pallas_src>

<mosaic_0001>
module attributes {stable_mosaic.version = 11 : i64} {
  func.func @_fused_gnn_kernel(%arg0: i32, %arg1: memref<16x8xbf16, #tpu.memory_space<vmem>>, %arg2: memref<8x32xbf16, #tpu.memory_space<vmem>>, %arg3: memref<8x32xbf16, #tpu.memory_space<vmem>>, %arg4: memref<1x32xf32, #tpu.memory_space<vmem>>, %arg5: memref<32x16xbf16, #tpu.memory_space<vmem>>, %arg6: memref<32x16xbf16, #tpu.memory_space<vmem>>, %arg7: memref<1x16xf32, #tpu.memory_space<vmem>>, %arg8: memref<16x16xbf16, #tpu.memory_space<any>>, %arg9: memref<16x16xf32, #tpu.memory_space<vmem>>, %arg10: memref<16x16xbf16, #tpu.memory_space<vmem>>, %arg11: memref<16x32xbf16, #tpu.memory_space<vmem>>, %arg12: memref<1x!tpu.dma_semaphore, #tpu.memory_space<semaphore_mem>>) attributes {dimension_semantics = [#tpu.dimension_semantics<arbitrary>], iteration_bounds = array<i64: 1>, scalar_prefetch = 0 : i64, scratch_operands = 3 : i64, tpu.core_type = #tpu.core_type<tc>, window_params = [{pipeline_mode = #tpu.pipeline_mode<synchronous>, transform_indices = @transform_0, window_bounds = array<i64: 16, 8>}, {pipeline_mode = #tpu.pipeline_mode<synchronous>, transform_indices = @transform_1, window_bounds = array<i64: 8, 32>}, {pipeline_mode = #tpu.pipeline_mode<synchronous>, transform_indices = @transform_2, window_bounds = array<i64: 8, 32>}, {pipeline_mode = #tpu.pipeline_mode<synchronous>, transform_indices = @transform_3, window_bounds = array<i64: 1, 32>}, {pipeline_mode = #tpu.pipeline_mode<synchronous>, transform_indices = @transform_4, window_bounds = array<i64: 32, 16>}, {pipeline_mode = #tpu.pipeline_mode<synchronous>, transform_indices = @transform_5, window_bounds = array<i64: 32, 16>}, {pipeline_mode = #tpu.pipeline_mode<synchronous>, transform_indices = @transform_6, window_bounds = array<i64: 1, 16>}, {}, {pipeline_mode = #tpu.pipeline_mode<synchronous>, transform_indices = @transform_8, window_bounds = array<i64: 16, 16>}]} {
    %c0_i32 = arith.constant 0 : i32
    %c0_i32_0 = arith.constant 0 : i32
    %c0_i32_1 = arith.constant 0 : i32
    %0 = tpu.memref_slice %arg8[%c0_i32_0, %c0_i32_1] : memref<16x16xbf16, #tpu.memory_space<any>> -> memref<16x16xbf16, #tpu.memory_space<any>>
    %c0_i32_2 = arith.constant 0 : i32
    %c0_i32_3 = arith.constant 0 : i32
    %1 = tpu.memref_slice %arg10[%c0_i32_2, %c0_i32_3] : memref<16x16xbf16, #tpu.memory_space<vmem>> -> memref<16x16xbf16, #tpu.memory_space<vmem>>
    %2 = tpu.memref_slice %arg12[%c0_i32] : memref<1x!tpu.dma_semaphore, #tpu.memory_space<semaphore_mem>> -> memref<1x!tpu.dma_semaphore, #tpu.memory_space<semaphore_mem>>
    %3 = tpu.memref_squeeze %2 : memref<1x!tpu.dma_semaphore, #tpu.memory_space<semaphore_mem>> -> memref<!tpu.dma_semaphore, #tpu.memory_space<semaphore_mem>>
    tpu.enqueue_dma source(%0 : memref<16x16xbf16, #tpu.memory_space<any>>) target(%1 : memref<16x16xbf16, #tpu.memory_space<vmem>>) target_semaphore(%3 : memref<!tpu.dma_semaphore, #tpu.memory_space<semaphore_mem>>)
    %c0 = arith.constant 0 : index
    %c0_4 = arith.constant 0 : index
    %4 = vector.load %arg1[%c0, %c0_4] : memref<16x8xbf16, #tpu.memory_space<vmem>>, vector<16x8xbf16>
    %c0_5 = arith.constant 0 : index
    %c0_6 = arith.constant 0 : index
    %5 = vector.load %arg2[%c0_5, %c0_6] : memref<8x32xbf16, #tpu.memory_space<vmem>>, vector<8x32xbf16>
    %c0_7 = arith.constant 0 : index
    %c0_8 = arith.constant 0 : index
    %6 = vector.load %arg3[%c0_7, %c0_8] : memref<8x32xbf16, #tpu.memory_space<vmem>>, vector<8x32xbf16>
    %c0_9 = arith.constant 0 : index
    %c0_10 = arith.constant 0 : index
    %7 = vector.load %arg4[%c0_9, %c0_10] : memref<1x32xf32, #tpu.memory_space<vmem>>, vector<1x32xf32>
    %c0_i32_11 = arith.constant 0 : i32
    %c0_i32_12 = arith.constant 0 : i32
    %c0_i32_13 = arith.constant 0 : i32
    %8 = tpu.memref_slice %arg8[%c0_i32_12, %c0_i32_13] : memref<16x16xbf16, #tpu.memory_space<any>> -> memref<16x16xbf16, #tpu.memory_space<any>>
    %c0_i32_14 = arith.constant 0 : i32
    %c0_i32_15 = arith.constant 0 : i32
    %9 = tpu.memref_slice %arg10[%c0_i32_14, %c0_i32_15] : memref<16x16xbf16, #tpu.memory_space<vmem>> -> memref<16x16xbf16, #tpu.memory_space<vmem>>
    %10 = tpu.memref_slice %arg12[%c0_i32_11] : memref<1x!tpu.dma_semaphore, #tpu.memory_space<semaphore_mem>> -> memref<1x!tpu.dma_semaphore, #tpu.memory_space<semaphore_mem>>
    %11 = tpu.memref_squeeze %10 : memref<1x!tpu.dma_semaphore, #tpu.memory_space<semaphore_mem>> -> memref<!tpu.dma_semaphore, #tpu.memory_space<semaphore_mem>>
    tpu.wait_dma2 semaphore(%11 : memref<!tpu.dma_semaphore, #tpu.memory_space<semaphore_mem>>) src(%8 : memref<16x16xbf16, #tpu.memory_space<any>>) dst(%9 : memref<16x16xbf16, #tpu.memory_space<vmem>>)
    %c0_16 = arith.constant 0 : index
    %c0_17 = arith.constant 0 : index
    %12 = vector.load %arg10[%c0_16, %c0_17] : memref<16x16xbf16, #tpu.memory_space<vmem>>, vector<16x16xbf16>
    %cst = arith.constant dense<0.000000e+00> : vector<16x8xf32>
    %13 = tpu.matmul %12, %4, %cst {dimension_numbers = #tpu.dot_dimension_numbers<[1], [0], [0], [1], [0, 0, 1, 1], [], []>} : vector<16x16xbf16>, vector<16x8xbf16>, vector<16x8xf32> -> vector<16x8xf32>
    %14 = arith.truncf %13 : vector<16x8xf32> to vector<16x8xbf16>
    %cst_18 = arith.constant dense<0.000000e+00> : vector<16x32xf32>
    %15 = tpu.matmul %14, %5, %cst_18 {dimension_numbers = #tpu.dot_dimension_numbers<[1], [0], [0], [1], [0, 0, 1, 1], [], []>} : vector<16x8xbf16>, vector<8x32xbf16>, vector<16x32xf32> -> vector<16x32xf32>
    %cst_19 = arith.constant dense<0.000000e+00> : vector<16x32xf32>
    %16 = tpu.matmul %4, %6, %cst_19 {dimension_numbers = #tpu.dot_dimension_numbers<[1], [0], [0], [1], [0, 0, 1, 1], [], []>} : vector<16x8xbf16>, vector<8x32xbf16>, vector<16x32xf32> -> vector<16x32xf32>
    %17 = arith.addf %15, %16 : vector<16x32xf32>
    %18 = vector.broadcast %7 : vector<1x32xf32> to vector<16x32xf32>
    %19 = arith.addf %17, %18 : vector<16x32xf32>
    %cst_20 = arith.constant 0.000000e+00 : f32
    %20 = vector.broadcast %cst_20 : f32 to vector<16x32xf32>
    %21 = arith.maximumf %19, %20 : vector<16x32xf32>
    %22 = arith.truncf %21 : vector<16x32xf32> to vector<16x32xbf16>
    %c0_21 = arith.constant 0 : index
    %c0_22 = arith.constant 0 : index
    %23 = vector.load %arg11[%c0_21, %c0_22] : memref<16x32xbf16, #tpu.memory_space<vmem>>, vector<16x32xbf16>
    tpu.vector_store %arg11[%c0_21, %c0_22], %22 {strides = array<i32>} : memref<16x32xbf16, #tpu.memory_space<vmem>>, vector<16x32xbf16>,
    %c0_23 = arith.constant 0 : index
    %c0_24 = arith.constant 0 : index
    %24 = vector.load %arg11[%c0_23, %c0_24] : memref<16x32xbf16, #tpu.memory_space<vmem>>, vector<16x32xbf16>
    %c0_25 = arith.constant 0 : index
    %c0_26 = arith.constant 0 : index
    %25 = vector.load %arg10[%c0_25, %c0_26] : memref<16x16xbf16, #tpu.memory_space<vmem>>, vector<16x16xbf16>
    %cst_27 = arith.constant dense<0.000000e+00> : vector<16x32xf32>
    %26 = tpu.matmul %25, %24, %cst_27 {dimension_numbers = #tpu.dot_dimension_numbers<[1], [0], [0], [1], [0, 0, 1, 1], [], []>} : vector<16x16xbf16>, vector<16x32xbf16>, vector<16x32xf32> -> vector<16x32xf32>
    %27 = arith.truncf %26 : vector<16x32xf32> to vector<16x32xbf16>
    %c0_28 = arith.constant 0 : index
    %c0_29 = arith.constant 0 : index
    %28 = vector.load %arg5[%c0_28, %c0_29] : memref<32x16xbf16, #tpu.memory_space<vmem>>, vector<32x16xbf16>
    %cst_30 = arith.constant dense<0.000000e+00> : vector<16x16xf32>
    %29 = tpu.matmul %27, %28, %cst_30 {dimension_numbers = #tpu.dot_dimension_numbers<[1], [0], [0], [1], [0, 0, 1, 1], [], []>} : vector<16x32xbf16>, vector<32x16xbf16>, vector<16x16xf32> -> vector<16x16xf32>
    %c0_31 = arith.constant 0 : index
    %c0_32 = arith.constant 0 : index
    %30 = vector.load %arg6[%c0_31, %c0_32] : memref<32x16xbf16, #tpu.memory_space<vmem>>, vector<32x16xbf16>
    %cst_33 = arith.constant dense<0.000000e+00> : vector<16x16xf32>
    %31 = tpu.matmul %24, %30, %cst_33 {dimension_numbers = #tpu.dot_dimension_numbers<[1], [0], [0], [1], [0, 0, 1, 1], [], []>} : vector<16x32xbf16>, vector<32x16xbf16>, vector<16x16xf32> -> vector<16x16xf32>
    %32 = arith.addf %29, %31 : vector<16x16xf32>
    %c0_34 = arith.constant 0 : index
    %c0_35 = arith.constant 0 : index
    %33 = vector.load %arg7[%c0_34, %c0_35] : memref<1x16xf32, #tpu.memory_space<vmem>>, vector<1x16xf32>
    %34 = vector.broadcast %33 : vector<1x16xf32> to vector<16x16xf32>
    %35 = arith.addf %32, %34 : vector<16x16xf32>
    %c0_36 = arith.constant 0 : index
    %c0_37 = arith.constant 0 : index
    %36 = vector.load %arg9[%c0_36, %c0_37] : memref<16x16xf32, #tpu.memory_space<vmem>>, vector<16x16xf32>
    tpu.vector_store %arg9[%c0_36, %c0_37], %35 {strides = array<i32>} : memref<16x16xf32, #tpu.memory_space<vmem>>, vector<16x16xf32>,
    return
  }
  func.func @transform_0(%arg0: i32) -> (i32, i32) {
    %c0_i32 = arith.constant 0 : i32
    %c0_i32_0 = arith.constant 0 : i32
    %c0_i32_1 = arith.constant 0 : i32
    return %c0_i32, %c0_i32_0 : i32, i32
  }
  func.func @transform_1(%arg0: i32) -> (i32, i32) {
    %c0_i32 = arith.constant 0 : i32
    %c0_i32_0 = arith.constant 0 : i32
    %c0_i32_1 = arith.constant 0 : i32
    return %c0_i32, %c0_i32_0 : i32, i32
  }
  func.func @transform_2(%arg0: i32) -> (i32, i32) {
    %c0_i32 = arith.constant 0 : i32
    %c0_i32_0 = arith.constant 0 : i32
    %c0_i32_1 = arith.constant 0 : i32
    return %c0_i32, %c0_i32_0 : i32, i32
  }
  func.func @transform_3(%arg0: i32) -> (i32, i32) {
    %c0_i32 = arith.constant 0 : i32
    %c0_i32_0 = arith.constant 0 : i32
    %c0_i32_1 = arith.constant 0 : i32
    return %c0_i32, %c0_i32_0 : i32, i32
  }
  func.func @transform_4(%arg0: i32) -> (i32, i32) {
    %c0_i32 = arith.constant 0 : i32
    %c0_i32_0 = arith.constant 0 : i32
    %c0_i32_1 = arith.constant 0 : i32
    return %c0_i32, %c0_i32_0 : i32, i32
  }
  func.func @transform_5(%arg0: i32) -> (i32, i32) {
    %c0_i32 = arith.constant 0 : i32
    %c0_i32_0 = arith.constant 0 : i32
    %c0_i32_1 = arith.constant 0 : i32
    return %c0_i32, %c0_i32_0 : i32, i32
  }
  func.func @transform_6(%arg0: i32) -> (i32, i32) {
    %c0_i32 = arith.constant 0 : i32
    %c0_i32_0 = arith.constant 0 : i32
    %c0_i32_1 = arith.constant 0 : i32
    return %c0_i32, %c0_i32_0 : i32, i32
  }
  func.func @transform_8(%arg0: i32) -> (i32, i32) {
    %c0_i32 = arith.constant 0 : i32
    %c0_i32_0 = arith.constant 0 : i32
    %c0_i32_1 = arith.constant 0 : i32
    return %c0_i32, %c0_i32_0 : i32, i32
  }
}

</mosaic_0001>

<llo_original>
// kernel: tpu_custom_call.1
$region0: #{tpu_custom_call.1}
  #allocation0 [shape = 'u32[]', space=smem, size = 0x4, offset = 0x4, fixed_abs, tag = 'smem constant byte address 0x4 - core index']
  #allocation1 [shape = 'u32[144,128]{1,0:T(1,128)}', space=vmem, size = 0x12000, scoped, tag = 'internal scratch']
  #allocation2 [shape = 'bf16[16,16]{1,0:T(16,128)(2,1)}', space=vmem, size = 0x1000, scoped, tag = 'scratch operand']
  #allocation3 [shape = 'bf16[16,32]{1,0:T(16,128)(2,1)}', space=vmem, size = 0x1000, scoped, tag = 'scratch operand']
  #allocation4 [shape = 's32[1]{0}', space=sflag, size = 0x4, scoped, tag = 'scratch operand']
  #allocation7 [shape = 's32[]', space=sflag, size = 0x4, offset = 0, fixed_abs, tag = 'sflag constant byte address 0x0 - dummy sync flag']
  %s0 = inlined_call_operand.vmem [shape: bf16[16,8], index: 0, kind: input, shape index: {}]
  %s1 = inlined_call_operand.vmem [shape: bf16[8,32], index: 1, kind: input, shape index: {}]
  %s2 = inlined_call_operand.vmem [shape: bf16[8,32], index: 2, kind: input, shape index: {}]
  %s3 = inlined_call_operand.vmem [shape: f32[1,32], index: 3, kind: input, shape index: {}]
  %s4 = inlined_call_operand.vmem [shape: bf16[32,16], index: 4, kind: input, shape index: {}]
  %s5 = inlined_call_operand.vmem [shape: bf16[32,16], index: 5, kind: input, shape index: {}]
  %s6 = inlined_call_operand.vmem [shape: f32[1,16], index: 6, kind: input, shape index: {}]
  %s7 = inlined_call_operand.vmem [shape: bf16[16,16], index: 7, kind: input, shape index: {}]
  %s8 = inlined_call_operand.hbm [shape: f32[16,16], index: 8, kind: output, shape index: {}]
  %s9 = sld [smem:[#allocation0]]
  $region72: #{tpu_custom_call.1} parent=0
    _
  %s11 = ssub.s32 1, %s9
  %s12 = scalar_select 0, %s11, %s9
  $region1: #{tpu_custom_call.1} parent=0
    #allocation5 [shape = 'u8[8192]{0}', space=vmem, size = 0x2000, scoped, tag = 'output window, operand 0, single buffered']
    #allocation6 [shape = 's32[1]{0}', space=sflag, size = 0x4, scoped, tag = 'scoped memory for tpu_custom_call.1']
    %13 = vsyncpa [#allocation6], 0
    // Predicated region
    $region2: #{tpu_custom_call.1} parent=1 // pred_check
      _
    $region3: #{tpu_custom_call.1} parent=1 // pred_check_branch
      %15 = sbr.rel (0) target = $region5
    $region4: #{tpu_custom_call.1} parent=1 // pred_region
      _
    $region5: #{tpu_custom_call.1} parent=1 // pred_fallthru
      _
    // Predicated region
    $region6: #{tpu_custom_call.1} parent=1 // pred_check
      _
    $region7: #{tpu_custom_call.1} parent=1 // pred_check_branch
      %17 = sbr.rel (0) target = $region9
    $region8: #{tpu_custom_call.1} parent=1 // pred_region
      _
    $region9: #{tpu_custom_call.1} parent=1 // pred_fallthru
      _
    // Predicated region
    $region10: #{tpu_custom_call.1} parent=1 // pred_check
      _
    $region11: #{tpu_custom_call.1} parent=1 // pred_check_branch
      %19 = sbr.rel (0) target = $region13
    $region12: #{tpu_custom_call.1} parent=1 // pred_region
      _
    $region13: #{tpu_custom_call.1} parent=1 // pred_fallthru
      _
    // Predicated region
    $region14: #{tpu_custom_call.1} parent=1 // pred_check
      _
    $region15: #{tpu_custom_call.1} parent=1 // pred_check_branch
      %21 = sbr.rel (0) target = $region17
    $region16: #{tpu_custom_call.1} parent=1 // pred_region
      _
    $region17: #{tpu_custom_call.1} parent=1 // pred_fallthru
      _
    // Predicated region
    $region18: #{tpu_custom_call.1} parent=1 // pred_check
      _
    $region19: #{tpu_custom_call.1} parent=1 // pred_check_branch
      %23 = sbr.rel (0) target = $region21
    $region20: #{tpu_custom_call.1} parent=1 // pred_region
      _
    $region21: #{tpu_custom_call.1} parent=1 // pred_fallthru
      _
    // Predicated region
    $region22: #{tpu_custom_call.1} parent=1 // pred_check
      _
    $region23: #{tpu_custom_call.1} parent=1 // pred_check_branch
      %25 = sbr.rel (0) target = $region25
    $region24: #{tpu_custom_call.1} parent=1 // pred_region
      _
    $region25: #{tpu_custom_call.1} parent=1 // pred_fallthru
      _
    // Predicated region
    $region26: #{tpu_custom_call.1} parent=1 // pred_check
      _
    $region27: #{tpu_custom_call.1} parent=1 // pred_check_branch
      %27 = sbr.rel (0) target = $region29
    $region28: #{tpu_custom_call.1} parent=1 // pred_region
      _
    $region29: #{tpu_custom_call.1} parent=1 // pred_fallthru
      _
    %p30 = scmp.lt.u32.totalorder 8, 8
    %p31 = pneg %p30
    // Predicated region
    $region30: #{tpu_custom_call.1} parent=1 // pred_check
      _
    $region31: #{tpu_custom_call.1} parent=1 // pred_check_branch
      %33 = sbr.rel (%p30) target = $region33
    $region32: #{tpu_custom_call.1} parent=1 // pred_region
      %s48 = sand.u32 8, 7
      %p49 = scmp.eq.s32.totalorder %s48, 0
      // Predicated region
      $region45: #{tpu_custom_call.1} parent=32 // pred_check
        %p50 = pneg %p49
      $region46: #{tpu_custom_call.1} parent=32 // pred_check_branch
        %52 = sbr.rel (%p50) target = $region48
      $region47: #{tpu_custom_call.1} parent=32 // pred_region
        loop: start=0, step=1, limit=1
        $region49: #{tpu_custom_call.1} parent=47 // loop_pre_header
          _
        $region50: #{tpu_custom_call.1} parent=47 // loop_header
          %s54 = sphi 0, %s58
          %p55 = scmp.ge.s32.totalorder %s54, 1
          %s59 = sphi %s7, %s7
          %s60 = sphi [#allocation2], [#allocation2]
        $region51: #{tpu_custom_call.1} parent=47 // loop_header_branch
          %57 = sbr.rel (%p55) target = $region55
        $region52: #{tpu_custom_call.1} parent=47 // loop_body
          %v61 = vld [vmem:[%s59] sm:$0xff]
          %62 = vst [vmem:[%s60] sm:$0xff] %v61
        $region53: #{tpu_custom_call.1} parent=47 // loop_footer
          %s58 = sadd.s32 1, %s54
        $region54: #{tpu_custom_call.1} parent=47 // loop_footer_branch
          %53 = sbr.rel target = $region50
        $region55: #{tpu_custom_call.1} parent=47 // loop_exit
          _
      $region48: #{tpu_custom_call.1} parent=32 // pred_fallthru
        _
      %p63 = pneg %p49
      // Predicated region
      $region56: #{tpu_custom_call.1} parent=32 // pred_check
        _
      $region57: #{tpu_custom_call.1} parent=32 // pred_check_branch
        %65 = sbr.rel (%p49) target = $region59
      $region58: #{tpu_custom_call.1} parent=32 // pred_region
        %s66 = sand.u32 8, 7
      $region59: #{tpu_custom_call.1} parent=32 // pred_fallthru
        _
    $region33: #{tpu_custom_call.1} parent=1 // pred_fallthru
      _
    // Predicated region
    $region34: #{tpu_custom_call.1} parent=1 // pred_check
      %p34 = pneg %p30
    $region35: #{tpu_custom_call.1} parent=1 // pred_check_branch
      %36 = sbr.rel (%p34) target = $region37
    $region36: #{tpu_custom_call.1} parent=1 // pred_region
      %s37 = sshllo.u32 0, 8
      loop: start=0, step=1, limit=1
      $region38: #{tpu_custom_call.1} parent=36 // loop_pre_header
        _
      $region39: #{tpu_custom_call.1} parent=36 // loop_header
        %s39 = sphi 0, %s43
        %p40 = scmp.ge.s32.totalorder %s39, 1
        %s44 = sphi %s7, %s7
        %s45 = sphi [#allocation2], [#allocation2]
      $region40: #{tpu_custom_call.1} parent=36 // loop_header_branch
        %42 = sbr.rel (%p40) target = $region44
      $region41: #{tpu_custom_call.1} parent=36 // loop_body
        %v46 = vld [vmem:[%s44] sm:%s37]
        %47 = vst [vmem:[%s45] sm:%s37] %v46
      $region42: #{tpu_custom_call.1} parent=36 // loop_footer
        %s43 = sadd.s32 1, %s39
      $region43: #{tpu_custom_call.1} parent=36 // loop_footer_branch
        %38 = sbr.rel target = $region39
      $region44: #{tpu_custom_call.1} parent=36 // loop_exit
        _
    $region37: #{tpu_custom_call.1} parent=1 // pred_fallthru
      _
    // Predicated region
    $region60: #{tpu_custom_call.1} parent=1 // pred_check
      _
    $region61: #{tpu_custom_call.1} parent=1 // pred_check_branch
      %69 = sbr.rel (0) target = $region63
    $region62: #{tpu_custom_call.1} parent=1 // pred_region
      %70 = vsyncadd [#allocation4], 128
    $region63: #{tpu_custom_call.1} parent=1 // pred_fallthru
      _
    %v71 = vld [vmem:[%s0] sm:$0xf]
    %v72 = vld [vmem:[%s0 + $0x4] sm:$0xf]
    %v73 = vld [vmem:[%s1] sm:$0xf]
    %v74 = vld [vmem:[%s2] sm:$0xf]
    %v75 = vld [vmem:[%s3] sm:$0x1]
    %s76 = smul.u32 4, 2
    %s77 = smul.u32 %s76, 1
    %s78 = sshll.u32 %s77, 4
    %79 = dma.done [#allocation4], %s78
    %v80 = vld [vmem:[#allocation2] sm:$0xff]
    %v83 = vunpack.c.l.b16 %v71
    %v84 = vunpack.c.l.b16 %v72
    %v85 = vpack.c.b16 %v84, %v83
    %vm87 = vcmask 130048
    %v89 = vsel %vm87, %v80, 0
    %91 = vmatprep.subr.bf16.mxu0 0
    %92 = vmatpush1.bf16.msra.mxu0 %v85
    %93 = vmatprep.subr.bf16.mxu0 0
    %94 = vmatpush1.bf16.msra.mxu0 0
    %95 = vmatprep.subr.bf16.mxu0 0
    %96 = vmatpush1.bf16.msra.mxu0 0
    %97 = vmatprep.subr.bf16.mxu0 0
    %98 = vmatpush1.bf16.msra.mxu0 0
    %99 = vmatprep.subr.bf16.mxu0 0
    %100 = vmatpush1.bf16.msra.mxu0 0
    %101 = vmatprep.subr.bf16.mxu0 0
    %102 = vmatpush1.bf16.msra.mxu0 0
    %103 = vmatprep.subr.bf16.mxu0 0
    %104 = vmatpush1.bf16.msra.mxu0 0
    %105 = vmatprep.subr.bf16.mxu0 0
    %106 = vmatpush1.bf16.msra.mxu0 0
    %107 = vmatprep.subr.bf16.mxu0 0
    %108 = vmatpush1.bf16.msra.mxu0 0
    %109 = vmatprep.subr.bf16.mxu0 0
    %110 = vmatpush1.bf16.msra.mxu0 0
    %111 = vmatprep.subr.bf16.mxu0 0
    %112 = vmatpush1.bf16.msra.mxu0 0
    %113 = vmatprep.subr.bf16.mxu0 0
    %114 = vmatpush1.bf16.msra.mxu0 0
    %115 = vmatprep.subr.bf16.mxu0 0
    %116 = vmatpush1.bf16.msra.mxu0 0
    %117 = vmatprep.subr.bf16.mxu0 0
    %118 = vmatpush1.bf16.msra.mxu0 0
    %119 = vmatprep.subr.bf16.mxu0 0
    %120 = vmatpush1.bf16.msra.mxu0 0
    %121 = vmatprep.subr.bf16.mxu0 0
    %122 = vmatpush1.bf16.msra.mxu0 0
    %123 = vmatprep.mubr.bf16.mxu0 0
    %124 = vmatmul.mubr.bf16.gmra.mrb[0].mxu0 %v89
    %v125 = vpop.f32.mrb[0].mxu0
    %v126 = vadd.f32 0.0, %v125
    %v127 = vpop.f32.mrb[0].mxu0
    %v128 = vpop.f32.mrb[0].mxu0
    %v129 = vadd.f32 0.0, %v128
    %v130 = vpop.f32.mrb[0].mxu0
    %131 = vdwg.mxu0
    %v132 = vpack.c.bf16 %v129, %v126
    %vm133 = vcmask 64512
    %v135 = vsel %vm133, %v85, 0
    %vm137 = vcmask 1043456
    %v139 = vsel %vm137, %v74, 0
    %141 = vmatprep.subr.bf16.mxu0 0
    %142 = vmatpush1.bf16.msra.mxu0 %v139
    %143 = vmatprep.subr.bf16.mxu0 0
    %144 = vmatpush1.bf16.msra.mxu0 0
    %145 = vmatprep.subr.bf16.mxu0 0
    %146 = vmatpush1.bf16.msra.mxu0 0
    %147 = vmatprep.subr.bf16.mxu0 0
    %148 = vmatpush1.bf16.msra.mxu0 0
    %149 = vmatprep.subr.bf16.mxu0 0
    %150 = vmatpush1.bf16.msra.mxu0 0
    %151 = vmatprep.subr.bf16.mxu0 0
    %152 = vmatpush1.bf16.msra.mxu0 0
    %153 = vmatprep.subr.bf16.mxu0 0
    %154 = vmatpush1.bf16.msra.mxu0 0
    %155 = vmatprep.subr.bf16.mxu0 0
    %156 = vmatpush1.bf16.msra.mxu0 0
    %157 = vmatprep.subr.bf16.mxu0 0
    %158 = vmatpush1.bf16.msra.mxu0 0
    %159 = vmatprep.subr.bf16.mxu0 0
    %160 = vmatpush1.bf16.msra.mxu0 0
    %161 = vmatprep.subr.bf16.mxu0 0
    %162 = vmatpush1.bf16.msra.mxu0 0
    %163 = vmatprep.subr.bf16.mxu0 0
    %164 = vmatpush1.bf16.msra.mxu0 0
    %165 = vmatprep.subr.bf16.mxu0 0
    %166 = vmatpush1.bf16.msra.mxu0 0
    %167 = vmatprep.subr.bf16.mxu0 0
    %168 = vmatpush1.bf16.msra.mxu0 0
    %169 = vmatprep.subr.bf16.mxu0 0
    %170 = vmatpush1.bf16.msra.mxu0 0
    %171 = vmatprep.subr.bf16.mxu0 0
    %172 = vmatpush1.bf16.msra.mxu0 0
    %173 = vmatprep.mubr.bf16.mxu0 0
    %174 = vmatmul.mubr.bf16.gmra.mrb[0].mxu0 %v135
    %v175 = vpop.f32.mrb[0].mxu0
    %v176 = vadd.f32 0.0, %v175
    %v177 = vpop.f32.mrb[0].mxu0
    %v178 = vpop.f32.mrb[0].mxu0
    %v179 = vadd.f32 0.0, %v178
    %v180 = vpop.f32.mrb[0].mxu0
    %181 = vdwg.mxu0
    %v183 = vsel %vm133, %v132, 0
    %v186 = vsel %vm137, %v73, 0
    %188 = vmatprep.subr.bf16.mxu0 0
    %189 = vmatpush1.bf16.msra.mxu0 %v186
    %190 = vmatprep.subr.bf16.mxu0 0
    %191 = vmatpush1.bf16.msra.mxu0 0
    %192 = vmatprep.subr.bf16.mxu0 0
    %193 = vmatpush1.bf16.msra.mxu0 0
    %194 = vmatprep.subr.bf16.mxu0 0
    %195 = vmatpush1.bf16.msra.mxu0 0
    %196 = vmatprep.subr.bf16.mxu0 0
    %197 = vmatpush1.bf16.msra.mxu0 0
    %198 = vmatprep.subr.bf16.mxu0 0
    %199 = vmatpush1.bf16.msra.mxu0 0
    %200 = vmatprep.subr.bf16.mxu0 0
    %201 = vmatpush1.bf16.msra.mxu0 0
    %202 = vmatprep.subr.bf16.mxu0 0
    %203 = vmatpush1.bf16.msra.mxu0 0
    %204 = vmatprep.subr.bf16.mxu0 0
    %205 = vmatpush1.bf16.msra.mxu0 0
    %206 = vmatprep.subr.bf16.mxu0 0
    %207 = vmatpush1.bf16.msra.mxu0 0
    %208 = vmatprep.subr.bf16.mxu0 0
    %209 = vmatpush1.bf16.msra.mxu0 0
    %210 = vmatprep.subr.bf16.mxu0 0
    %211 = vmatpush1.bf16.msra.mxu0 0
    %212 = vmatprep.subr.bf16.mxu0 0
    %213 = vmatpush1.bf16.msra.mxu0 0
    %214 = vmatprep.subr.bf16.mxu0 0
    %215 = vmatpush1.bf16.msra.mxu0 0
    %216 = vmatprep.subr.bf16.mxu0 0
    %217 = vmatpush1.bf16.msra.mxu0 0
    %218 = vmatprep.subr.bf16.mxu0 0
    %219 = vmatpush1.bf16.msra.mxu0 0
    %220 = vmatprep.mubr.bf16.mxu0 0
    %221 = vmatmul.mubr.bf16.gmra.mrb[0].mxu0 %v183
    %v222 = vpop.f32.mrb[0].mxu0
    %v223 = vadd.f32 %v176, %v222
    %v224 = vpop.f32.mrb[0].mxu0
    %v225 = vpop.f32.mrb[0].mxu0
    %v226 = vadd.f32 %v179, %v225
    %v227 = vpop.f32.mrb[0].mxu0
    %228 = vdwg.mxu0
    %v230 = vlaneseq
    %v231 = vshrl.u32 %v230, 7
    %v232 = vsub.s32 0, %v231
    %v233 = vrot.slane %v75, %v232
    %v235 = vadd.f32 %v223, %v233
    %v236 = vadd.f32 %v226, %v233
    %v237 = vmax.f32 %v235, 0.0
    %v238 = vmax.f32 %v236, 0.0
    %v239 = vpack.c.bf16 %v238, %v237
    %vm240 = vcmask 261120
    %241 = vst.msk [vmem:[#allocation3] sm:$0xff] %vm240, %v239
    %v242 = vld [vmem:[#allocation3] sm:$0xff]
    %v243 = vld [vmem:[#allocation2] sm:$0xff]
    %v245 = vsel %vm87, %v243, 0
    %247 = vmatprep.subr.bf16.mxu0 0
    %248 = vmatpush1.bf16.msra.mxu0 %v242
    %249 = vmatprep.subr.bf16.mxu0 0
    %250 = vmatpush1.bf16.msra.mxu0 0
    %251 = vmatprep.subr.bf16.mxu0 0
    %252 = vmatpush1.bf16.msra.mxu0 0
    %253 = vmatprep.subr.bf16.mxu0 0
    %254 = vmatpush1.bf16.msra.mxu0 0
    %255 = vmatprep.subr.bf16.mxu0 0
    %256 = vmatpush1.bf16.msra.mxu0 0
    %257 = vmatprep.subr.bf16.mxu0 0
    %258 = vmatpush1.bf16.msra.mxu0 0
    %259 = vmatprep.subr.bf16.mxu0 0
    %260 = vmatpush1.bf16.msra.mxu0 0
    %261 = vmatprep.subr.bf16.mxu0 0
    %262 = vmatpush1.bf16.msra.mxu0 0
    %263 = vmatprep.subr.bf16.mxu0 0
    %264 = vmatpush1.bf16.msra.mxu0 0
    %265 = vmatprep.subr.bf16.mxu0 0
    %266 = vmatpush1.bf16.msra.mxu0 0
    %267 = vmatprep.subr.bf16.mxu0 0
    %268 = vmatpush1.bf16.msra.mxu0 0
    %269 = vmatprep.subr.bf16.mxu0 0
    %270 = vmatpush1.bf16.msra.mxu0 0
    %271 = vmatprep.subr.bf16.mxu0 0
    %272 = vmatpush1.bf16.msra.mxu0 0
    %273 = vmatprep.subr.bf16.mxu0 0
    %274 = vmatpush1.bf16.msra.mxu0 0
    %275 = vmatprep.subr.bf16.mxu0 0
    %276 = vmatpush1.bf16.msra.mxu0 0
    %277 = vmatprep.subr.bf16.mxu0 0
    %278 = vmatpush1.bf16.msra.mxu0 0
    %279 = vmatprep.mubr.bf16.mxu0 0
    %280 = vmatmul.mubr.bf16.gmra.mrb[0].mxu0 %v245
    %v281 = vpop.f32.mrb[0].mxu0
    %v282 = vadd.f32 0.0, %v281
    %v283 = vpop.f32.mrb[0].mxu0
    %v284 = vpop.f32.mrb[0].mxu0
    %v285 = vadd.f32 0.0, %v284
    %v286 = vpop.f32.mrb[0].mxu0
    %287 = vdwg.mxu0
    %v288 = vpack.c.bf16 %v285, %v282
    %v289 = vld [vmem:[%s4] sm:$0xf]
    %v290 = vld [vmem:[%s4 + $0x4] sm:$0xf]
    %v291 = vld [vmem:[%s4 + $0x8] sm:$0xf]
    %v292 = vld [vmem:[%s4 + $0xc] sm:$0xf]
    %v293 = vld [vmem:[%s5] sm:$0xf]
    %v294 = vld [vmem:[%s5 + $0x4] sm:$0xf]
    %v295 = vld [vmem:[%s5 + $0x8] sm:$0xf]
    %v296 = vld [vmem:[%s5 + $0xc] sm:$0xf]
    %v301 = vunpack.c.l.b16 %v293
    %v302 = vunpack.c.l.b16 %v294
    %v303 = vunpack.c.l.b16 %v295
    %v304 = vunpack.c.l.b16 %v296
    %v305 = vpack.c.b16 %v302, %v301
    %v306 = vpack.c.b16 %v304, %v303
    %v310 = vsel %vm240, %v242, 0
    %312 = vmatprep.subr.bf16.mxu0 0
    %313 = vmatpush1.bf16.msra.mxu0 %v305
    %314 = vmatprep.subr.bf16.mxu0 0
    %315 = vmatpush1.bf16.msra.mxu0 %v306
    %316 = vmatprep.subr.bf16.mxu0 0
    %317 = vmatpush1.bf16.msra.mxu0 0
    %318 = vmatprep.subr.bf16.mxu0 0
    %319 = vmatpush1.bf16.msra.mxu0 0
    %320 = vmatprep.subr.bf16.mxu0 0
    %321 = vmatpush1.bf16.msra.mxu0 0
    %322 = vmatprep.subr.bf16.mxu0 0
    %323 = vmatpush1.bf16.msra.mxu0 0
    %324 = vmatprep.subr.bf16.mxu0 0
    %325 = vmatpush1.bf16.msra.mxu0 0
    %326 = vmatprep.subr.bf16.mxu0 0
    %327 = vmatpush1.bf16.msra.mxu0 0
    %328 = vmatprep.subr.bf16.mxu0 0
    %329 = vmatpush1.bf16.msra.mxu0 0
    %330 = vmatprep.subr.bf16.mxu0 0
    %331 = vmatpush1.bf16.msra.mxu0 0
    %332 = vmatprep.subr.bf16.mxu0 0
    %333 = vmatpush1.bf16.msra.mxu0 0
    %334 = vmatprep.subr.bf16.mxu0 0
    %335 = vmatpush1.bf16.msra.mxu0 0
    %336 = vmatprep.subr.bf16.mxu0 0
    %337 = vmatpush1.bf16.msra.mxu0 0
    %338 = vmatprep.subr.bf16.mxu0 0
    %339 = vmatpush1.bf16.msra.mxu0 0
    %340 = vmatprep.subr.bf16.mxu0 0
    %341 = vmatpush1.bf16.msra.mxu0 0
    %342 = vmatprep.subr.bf16.mxu0 0
    %343 = vmatpush1.bf16.msra.mxu0 0
    %344 = vmatprep.mubr.bf16.mxu0 0
    %345 = vmatmul.mubr.bf16.gmra.mrb[0].mxu0 %v310
    %v346 = vpop.f32.mrb[0].mxu0
    %v347 = vadd.f32 0.0, %v346
    %v348 = vpop.f32.mrb[0].mxu0
    %v349 = vpop.f32.mrb[0].mxu0
    %v350 = vadd.f32 0.0, %v349
    %v351 = vpop.f32.mrb[0].mxu0
    %352 = vdwg.mxu0
    %v357 = vunpack.c.l.b16 %v289
    %v358 = vunpack.c.l.b16 %v290
    %v359 = vunpack.c.l.b16 %v291
    %v360 = vunpack.c.l.b16 %v292
    %v361 = vpack.c.b16 %v358, %v357
    %v362 = vpack.c.b16 %v360, %v359
    %v366 = vsel %vm240, %v288, 0
    %368 = vmatprep.subr.bf16.mxu0 0
    %369 = vmatpush1.bf16.msra.mxu0 %v361
    %370 = vmatprep.subr.bf16.mxu0 0
    %371 = vmatpush1.bf16.msra.mxu0 %v362
    %372 = vmatprep.subr.bf16.mxu0 0
    %373 = vmatpush1.bf16.msra.mxu0 0
    %374 = vmatprep.subr.bf16.mxu0 0
    %375 = vmatpush1.bf16.msra.mxu0 0
    %376 = vmatprep.subr.bf16.mxu0 0
    %377 = vmatpush1.bf16.msra.mxu0 0
    %378 = vmatprep.subr.bf16.mxu0 0
    %379 = vmatpush1.bf16.msra.mxu0 0
    %380 = vmatprep.subr.bf16.mxu0 0
    %381 = vmatpush1.bf16.msra.mxu0 0
    %382 = vmatprep.subr.bf16.mxu0 0
    %383 = vmatpush1.bf16.msra.mxu0 0
    %384 = vmatprep.subr.bf16.mxu0 0
    %385 = vmatpush1.bf16.msra.mxu0 0
    %386 = vmatprep.subr.bf16.mxu0 0
    %387 = vmatpush1.bf16.msra.mxu0 0
    %388 = vmatprep.subr.bf16.mxu0 0
    %389 = vmatpush1.bf16.msra.mxu0 0
    %390 = vmatprep.subr.bf16.mxu0 0
    %391 = vmatpush1.bf16.msra.mxu0 0
    %392 = vmatprep.subr.bf16.mxu0 0
    %393 = vmatpush1.bf16.msra.mxu0 0
    %394 = vmatprep.subr.bf16.mxu0 0
    %395 = vmatpush1.bf16.msra.mxu0 0
    %396 = vmatprep.subr.bf16.mxu0 0
    %397 = vmatpush1.bf16.msra.mxu0 0
    %398 = vmatprep.subr.bf16.mxu0 0
    %399 = vmatpush1.bf16.msra.mxu0 0
    %400 = vmatprep.mubr.bf16.mxu0 0
    %401 = vmatmul.mubr.bf16.gmra.mrb[0].mxu0 %v366
    %v402 = vpop.f32.mrb[0].mxu0
    %v403 = vadd.f32 %v347, %v402
    %v404 = vpop.f32.mrb[0].mxu0
    %v405 = vpop.f32.mrb[0].mxu0
    %v406 = vadd.f32 %v350, %v405
    %v407 = vpop.f32.mrb[0].mxu0
    %408 = vdwg.mxu0
    %v409 = vld [vmem:[%s6] sm:$0x1]
    %v411 = vlaneseq
    %v412 = vshrl.u32 %v411, 7
    %v413 = vsub.s32 0, %v412
    %v414 = vrot.slane %v409, %v413
    %v416 = vadd.f32 %v403, %v414
    %v417 = vadd.f32 %v406, %v414
    %418 = vst.msk [vmem:[#allocation5] sm:$0xff] %vm87, %v416
    %419 = vst.msk [vmem:[#allocation5 + $0x8] sm:$0xff] %vm87, %v417
    // Predicated region
    $region64: #{tpu_custom_call.1} parent=1 // pred_check
      _
    $region65: #{tpu_custom_call.1} parent=1 // pred_check_branch
      %421 = sbr.rel (0) target = $region67
    $region66: #{tpu_custom_call.1} parent=1 // pred_region
      %s423 = ssub.s32 256, 256
      %424 = vsyncadd [#allocation6], %s423
      %s425 = sshll.u32 [#allocation5], 4
      %s426 = int_to_ptr.vmem [resolvable:$true] %s425
      %431 = dma.vmem_to_hbm [thread:$0]  %s426, 256, %s8, [#allocation6], 128, 128, 8
    $region67: #{tpu_custom_call.1} parent=1 // pred_fallthru
      _
    // Predicated region
    $region68: #{tpu_custom_call.1} parent=1 // pred_check
      _
    $region69: #{tpu_custom_call.1} parent=1 // pred_check_branch
      %433 = sbr.rel (0) target = $region71
    $region70: #{tpu_custom_call.1} parent=1 // pred_region
      %434 = dma.done [#allocation6], 256
    $region71: #{tpu_custom_call.1} parent=1 // pred_fallthru
      _
    %435 = vsyncpa [#allocation6], 1
  %436 = vsyncmov [#allocation4]
  %s437 = vpop.sfrf %436
  %p438 = scmp.eq.s32.totalorder %s437, 0
  %p439 = pneg %p438
  %441 = shalt.err (%p439)

</llo_original>
